<compile_context>
chip_gen: v7x
topology: tpu7x:2x2x1
jax: 0.10.0
libtpu: 0.0.40
codegen_flags: <defaults>
</compile_context>

<pallas_src>
import functools

import jax
import jax.numpy as jnp
from jax.experimental import pallas as pl
from jax.experimental.pallas import tpu as pltpu

LANE = 128
# 4096 * 128 * 4 B = 2 MiB per f32 input block; 2 inputs x 2 pipeline buffers
# = 8 MiB, safe under default scoped VMEM on v5e (16 MiB) / v6e / v7x (32 MiB).
DEFAULT_BLOCK_ROWS = 4096


def _round_up(x, m):
    return ((x + m - 1) // m) * m


def _focal_loss_kernel(pred_ref, gt_ref, out_ref, loss_acc, npos_acc, *,
                       total_rows, block_rows, ragged):
    i = pl.program_id(0)

    @pl.when(i == 0)
    def _init():
        loss_acc[...] = jnp.zeros_like(loss_acc)
        npos_acc[...] = jnp.zeros_like(npos_acc)

    pred = pred_ref[...].astype(jnp.float32)
    gt = gt_ref[...].astype(jnp.float32)

    is_pos = gt > 0.0
    is_neg = gt == 0.0
    if ragged:
        # Mask rows beyond the real extent (uninitialized VMEM in the last block).
        row = jax.lax.broadcasted_iota(jnp.int32, pred.shape, 0) + i * block_rows
        valid = row < total_rows
        is_pos = jnp.logical_and(is_pos, valid)
        is_neg = jnp.logical_and(is_neg, valid)

    one_minus = 1.0 - pred
    # Single log per element (EUP); where-selects keep masked/garbage lanes finite.
    base = jnp.where(is_pos, pred, jnp.where(is_neg, one_minus, 1.0))
    w = jnp.where(is_pos, one_minus, jnp.where(is_neg, pred, 0.0))
    term = jnp.log(base) * w * w

    pw = gt * gt
    weight = jnp.where(is_pos, pw, is_neg.astype(jnp.float32))
    loss_contrib = term * weight                 # pos_loss + neg_loss, elementwise
    npos_contrib = jnp.where(is_pos, pw, 0.0)    # num_pos = sum(gt^2 * pos_inds)

    # Vector accumulation into (8, 128) accumulators: reshape groups rows into
    # native (8, 128) tiles, so the axis-0 sum is pure VALU adds (no per-step XLU).
    sub = block_rows // 8
    loss_acc[...] += jnp.sum(loss_contrib.reshape(sub, 8, LANE), axis=0)
    npos_acc[...] += jnp.sum(npos_contrib.reshape(sub, 8, LANE), axis=0)

    @pl.when(i == pl.num_programs(0) - 1)
    def _finalize():
        total = jnp.sum(loss_acc[...])
        npos = jnp.sum(npos_acc[...])
        # num_pos == 0  =>  pos_sum == 0, so -total/1 == -neg_sum (matches torch).
        denom = jnp.where(npos > 0.0, npos, 1.0)
        out_ref[0, 0] = -total / denom


def focal_loss(pred, gt):
    """Pallas implementation of FocalLoss.forward(out, target). Returns scalar f32."""
    assert pred.shape == gt.shape
    n = 1
    for d in pred.shape:
        n *= d

    if n % LANE == 0:
        pred2 = pred.reshape(-1, LANE)
        gt2 = gt.reshape(-1, LANE)
    else:
        # Rare for conv heatmaps; zero pad is exactly neutral for this loss
        # (gt=0, pred=0 -> log(1) * 0^2 = 0, and contributes 0 to num_pos).
        pad = LANE - n % LANE
        pred2 = jnp.pad(pred.reshape(-1), (0, pad)).reshape(-1, LANE)
        gt2 = jnp.pad(gt.reshape(-1), (0, pad)).reshape(-1, LANE)

    rows = pred2.shape[0]
    block_rows = min(DEFAULT_BLOCK_ROWS, _round_up(rows, 32))
    n_tiles = pl.cdiv(rows, block_rows)
    ragged = (rows % block_rows) != 0

    kernel = functools.partial(
        _focal_loss_kernel,
        total_rows=rows,
        block_rows=block_rows,
        ragged=ragged,
    )

    out = pl.pallas_call(
        kernel,
        out_shape=jax.ShapeDtypeStruct((1, 1), jnp.float32),
        grid_spec=pltpu.PrefetchScalarGridSpec(
            num_scalar_prefetch=0,
            grid=(n_tiles,),
            in_specs=[
                pl.BlockSpec((block_rows, LANE), lambda i: (i, 0)),
                pl.BlockSpec((block_rows, LANE), lambda i: (i, 0)),
            ],
            out_specs=pl.BlockSpec(memory_space=pltpu.MemorySpace.SMEM),
            scratch_shapes=[
                pltpu.VMEM((8, LANE), jnp.float32),   # sum(pos_loss + neg_loss)
                pltpu.VMEM((8, LANE), jnp.float32),   # num_pos
            ],
        ),
        compiler_params=pltpu.CompilerParams(
            dimension_semantics=("arbitrary",)),
    )(pred2, gt2)
    return out[0, 0]


def focal_loss_ref(pred, gt):
    """Pure-JAX reference matching the PyTorch _neg_loss semantics."""
    pred = pred.astype(jnp.float32)
    gt = gt.astype(jnp.float32)
    pos_inds = (gt > 0).astype(jnp.float32)
    neg_inds = (gt == 0).astype(jnp.float32)
    pos_weights = gt ** 2
    pos_loss = jnp.log(pred) * (1 - pred) ** 2 * pos_weights * pos_inds
    neg_loss = jnp.log(1 - pred) * pred ** 2 * neg_inds
    num_pos = jnp.sum(pos_weights * pos_inds)
    pos_sum = jnp.sum(pos_loss)
    neg_sum = jnp.sum(neg_loss)
    return jnp.where(num_pos == 0.0, -neg_sum, -(pos_sum + neg_sum) / num_pos)


if __name__ == "__main__":
    key = jax.random.PRNGKey(0)
    k1, k2, k3, k4 = jax.random.split(key, 4)

    B, C, H, W = 2, 4, 16, 16  # NCHW, matches the PyTorch module's expected inputs

    # pred in (0, 1) like a sigmoid heatmap output
    pred = jax.nn.sigmoid(jax.random.normal(k1, (B, C, H, W), jnp.float32))
    # gt: sparse CenterNet-style heatmap target in [0, 1] with many exact zeros
    u = jax.random.uniform(k2, (B, C, H, W), jnp.float32)
    gt = jnp.where(u < 0.7, 0.0, u)

    loss = focal_loss(pred, gt)
    jax.block_until_ready(loss)
    ref = focal_loss_ref(pred, gt)
    assert jnp.allclose(loss, ref, rtol=1e-5, atol=1e-5), (loss, ref)

    # Ragged case: element count not a multiple of 128 (exercises pad + row mask).
    shape2 = (1, 2, 5, 7)
    pred_r = jax.nn.sigmoid(jax.random.normal(k3, shape2, jnp.float32))
    u_r = jax.random.uniform(k4, shape2, jnp.float32)
    gt_r = jnp.where(u_r < 0.7, 0.0, u_r)

    loss_r = focal_loss(pred_r, gt_r)
    jax.block_until_ready(loss_r)
    ref_r = focal_loss_ref(pred_r, gt_r)
    assert jnp.allclose(loss_r, ref_r, rtol=1e-5, atol=1e-5), (loss_r, ref_r)

    print("KERNEL_OK")
</pallas_src>

<mosaic_0001>
module attributes {stable_mosaic.version = 11 : i64} {
  func.func @_focal_loss_kernel(%arg0: i32, %arg1: memref<32x128xf32, #tpu.memory_space<vmem>>, %arg2: memref<32x128xf32, #tpu.memory_space<vmem>>, %arg3: memref<1x1xf32, #tpu.memory_space<smem>>, %arg4: memref<8x128xf32, #tpu.memory_space<vmem>>, %arg5: memref<8x128xf32, #tpu.memory_space<vmem>>) attributes {dimension_semantics = [#tpu.dimension_semantics<arbitrary>], iteration_bounds = array<i64: 1>, scalar_prefetch = 0 : i64, scratch_operands = 2 : i64, tpu.core_type = #tpu.core_type<tc>, window_params = [{transform_indices = @transform_0, window_bounds = array<i64: 32, 128>}, {transform_indices = @transform_1, window_bounds = array<i64: 32, 128>}, {transform_indices = @transform_2, window_bounds = array<i64: 1, 1>}]} {
    %c0_i32 = arith.constant 0 : i32
    %0 = arith.cmpi eq, %arg0, %c0_i32 : i32
    %1 = arith.extui %0 : i1 to i32
    %c0_i32_0 = arith.constant 0 : i32
    %2 = arith.cmpi ne, %1, %c0_i32_0 : i32
    scf.if %2 {
      %cst_21 = arith.constant 0.000000e+00 : f32
      %48 = vector.broadcast %cst_21 : f32 to vector<8x128xf32>
      %c0_22 = arith.constant 0 : index
      %c0_23 = arith.constant 0 : index
      %49 = vector.load %arg4[%c0_22, %c0_23] : memref<8x128xf32, #tpu.memory_space<vmem>>, vector<8x128xf32>
      tpu.vector_store %arg4[%c0_22, %c0_23], %48 {strides = array<i32>} : memref<8x128xf32, #tpu.memory_space<vmem>>, vector<8x128xf32>,
      %cst_24 = arith.constant 0.000000e+00 : f32
      %50 = vector.broadcast %cst_24 : f32 to vector<8x128xf32>
      %c0_25 = arith.constant 0 : index
      %c0_26 = arith.constant 0 : index
      %51 = vector.load %arg5[%c0_25, %c0_26] : memref<8x128xf32, #tpu.memory_space<vmem>>, vector<8x128xf32>
      tpu.vector_store %arg5[%c0_25, %c0_26], %50 {strides = array<i32>} : memref<8x128xf32, #tpu.memory_space<vmem>>, vector<8x128xf32>,
    } else {
    }
    %c0 = arith.constant 0 : index
    %c0_1 = arith.constant 0 : index
    %3 = vector.load %arg1[%c0, %c0_1] : memref<32x128xf32, #tpu.memory_space<vmem>>, vector<32x128xf32>
    %c0_2 = arith.constant 0 : index
    %c0_3 = arith.constant 0 : index
    %4 = vector.load %arg2[%c0_2, %c0_3] : memref<32x128xf32, #tpu.memory_space<vmem>>, vector<32x128xf32>
    %cst = arith.constant 0.000000e+00 : f32
    %5 = vector.broadcast %cst : f32 to vector<32x128xf32>
    %6 = arith.cmpf ogt, %4, %5 : vector<32x128xf32>
    %cst_4 = arith.constant 0.000000e+00 : f32
    %7 = vector.broadcast %cst_4 : f32 to vector<32x128xf32>
    %8 = arith.cmpf oeq, %4, %7 : vector<32x128xf32>
    %9 = tpu.iota {dimensions = array<i32: 0>} : vector<32x128xi32>
    %c32_i32 = arith.constant 32 : i32
    %10 = arith.muli %arg0, %c32_i32 : i32
    %11 = vector.broadcast %10 : i32 to vector<32x128xi32>
    %12 = arith.addi %9, %11 : vector<32x128xi32>
    %c16_i32 = arith.constant 16 : i32
    %13 = vector.broadcast %c16_i32 : i32 to vector<32x128xi32>
    %14 = arith.cmpi slt, %12, %13 : vector<32x128xi32>
    %15 = arith.andi %6, %14 : vector<32x128xi1>
    %16 = arith.andi %8, %14 : vector<32x128xi1>
    %cst_5 = arith.constant 1.000000e+00 : f32
    %17 = vector.broadcast %cst_5 : f32 to vector<32x128xf32>
    %18 = arith.subf %17, %3 : vector<32x128xf32>
    %cst_6 = arith.constant 1.000000e+00 : f32
    %19 = vector.broadcast %cst_6 : f32 to vector<32x128xf32>
    %20 = arith.select %16, %18, %19 : vector<32x128xi1>, vector<32x128xf32>
    %21 = arith.select %15, %3, %20 : vector<32x128xi1>, vector<32x128xf32>
    %cst_7 = arith.constant 0.000000e+00 : f32
    %22 = vector.broadcast %cst_7 : f32 to vector<32x128xf32>
    %23 = arith.select %16, %3, %22 : vector<32x128xi1>, vector<32x128xf32>
    %24 = arith.select %15, %18, %23 : vector<32x128xi1>, vector<32x128xf32>
    %25 = math.log %21 : vector<32x128xf32>
    %26 = arith.mulf %25, %24 : vector<32x128xf32>
    %27 = arith.mulf %26, %24 : vector<32x128xf32>
    %28 = arith.mulf %4, %4 : vector<32x128xf32>
    %29 = arith.extui %16 : vector<32x128xi1> to vector<32x128xi32>
    %30 = arith.sitofp %29 : vector<32x128xi32> to vector<32x128xf32>
    %31 = arith.select %15, %28, %30 : vector<32x128xi1>, vector<32x128xf32>
    %32 = arith.mulf %27, %31 : vector<32x128xf32>
    %cst_8 = arith.constant 0.000000e+00 : f32
    %33 = vector.broadcast %cst_8 : f32 to vector<32x128xf32>
    %34 = arith.select %15, %28, %33 : vector<32x128xi1>, vector<32x128xf32>
    %c0_9 = arith.constant 0 : index
    %c0_10 = arith.constant 0 : index
    %35 = vector.load %arg4[%c0_9, %c0_10] : memref<8x128xf32, #tpu.memory_space<vmem>>, vector<8x128xf32>
    %36 = vector.shape_cast %32 : vector<32x128xf32> to vector<4x8x128xf32>
    %cst_11 = arith.constant dense<0.000000e+00> : vector<8x128xf32>
    %37 = vector.multi_reduction <add>, %36, %cst_11 [0] : vector<4x8x128xf32> to vector<8x128xf32>
    %38 = arith.addf %35, %37 : vector<8x128xf32>
    %c0_12 = arith.constant 0 : index
    %c0_13 = arith.constant 0 : index
    %39 = vector.load %arg4[%c0_12, %c0_13] : memref<8x128xf32, #tpu.memory_space<vmem>>, vector<8x128xf32>
    tpu.vector_store %arg4[%c0_12, %c0_13], %38 {strides = array<i32>} : memref<8x128xf32, #tpu.memory_space<vmem>>, vector<8x128xf32>,
    %c0_14 = arith.constant 0 : index
    %c0_15 = arith.constant 0 : index
    %40 = vector.load %arg5[%c0_14, %c0_15] : memref<8x128xf32, #tpu.memory_space<vmem>>, vector<8x128xf32>
    %41 = vector.shape_cast %34 : vector<32x128xf32> to vector<4x8x128xf32>
    %cst_16 = arith.constant dense<0.000000e+00> : vector<8x128xf32>
    %42 = vector.multi_reduction <add>, %41, %cst_16 [0] : vector<4x8x128xf32> to vector<8x128xf32>
    %43 = arith.addf %40, %42 : vector<8x128xf32>
    %c0_17 = arith.constant 0 : index
    %c0_18 = arith.constant 0 : index
    %44 = vector.load %arg5[%c0_17, %c0_18] : memref<8x128xf32, #tpu.memory_space<vmem>>, vector<8x128xf32>
    tpu.vector_store %arg5[%c0_17, %c0_18], %43 {strides = array<i32>} : memref<8x128xf32, #tpu.memory_space<vmem>>, vector<8x128xf32>,
    %c0_i32_19 = arith.constant 0 : i32
    %45 = arith.cmpi eq, %arg0, %c0_i32_19 : i32
    %46 = arith.extui %45 : i1 to i32
    %c0_i32_20 = arith.constant 0 : i32
    %47 = arith.cmpi ne, %46, %c0_i32_20 : i32
    scf.if %47 {
      %c0_21 = arith.constant 0 : index
      %c0_22 = arith.constant 0 : index
      %48 = vector.load %arg4[%c0_21, %c0_22] : memref<8x128xf32, #tpu.memory_space<vmem>>, vector<8x128xf32>
      %49 = vector.shape_cast %48 : vector<8x128xf32> to vector<1x8x128xf32>
      %cst_23 = arith.constant dense<0.000000e+00> : vector<1xf32>
      %50 = vector.multi_reduction <add>, %49, %cst_23 [1, 2] : vector<1x8x128xf32> to vector<1xf32>
      %51 = vector.shape_cast %50 : vector<1xf32> to vector<1x1x1xf32>
      %52 = vector.extract %51[0, 0, 0] : f32 from vector<1x1x1xf32>
      %c0_24 = arith.constant 0 : index
      %c0_25 = arith.constant 0 : index
      %53 = vector.load %arg5[%c0_24, %c0_25] : memref<8x128xf32, #tpu.memory_space<vmem>>, vector<8x128xf32>
      %54 = vector.shape_cast %53 : vector<8x128xf32> to vector<1x8x128xf32>
      %cst_26 = arith.constant dense<0.000000e+00> : vector<1xf32>
      %55 = vector.multi_reduction <add>, %54, %cst_26 [1, 2] : vector<1x8x128xf32> to vector<1xf32>
      %56 = vector.shape_cast %55 : vector<1xf32> to vector<1x1x1xf32>
      %57 = vector.extract %56[0, 0, 0] : f32 from vector<1x1x1xf32>
      %cst_27 = arith.constant 0.000000e+00 : f32
      %58 = arith.cmpf ogt, %57, %cst_27 : f32
      %cst_28 = arith.constant 1.000000e+00 : f32
      %59 = arith.select %58, %57, %cst_28 : f32
      %cst_29 = arith.constant 0.000000e+00 : f32
      %60 = arith.subf %cst_29, %52 : f32
      %61 = arith.divf %60, %59 : f32
      %c0_30 = arith.constant 0 : index
      %c0_31 = arith.constant 0 : index
      %62 = memref.load %arg3[%c0_30, %c0_31] : memref<1x1xf32, #tpu.memory_space<smem>>
      memref.store %61, %arg3[%c0_30, %c0_31] : memref<1x1xf32, #tpu.memory_space<smem>>
    } else {
    }
    return
  }
  func.func @transform_0(%arg0: i32) -> (i32, i32) {
    %c0_i32 = arith.constant 0 : i32
    %c0_i32_0 = arith.constant 0 : i32
    return %arg0, %c0_i32 : i32, i32
  }
  func.func @transform_1(%arg0: i32) -> (i32, i32) {
    %c0_i32 = arith.constant 0 : i32
    %c0_i32_0 = arith.constant 0 : i32
    return %arg0, %c0_i32 : i32, i32
  }
  func.func @transform_2(%arg0: i32) -> (i32, i32) {
    %c0_i32 = arith.constant 0 : i32
    %c0_i32_0 = arith.constant 0 : i32
    %c0_i32_1 = arith.constant 0 : i32
    return %c0_i32, %c0_i32_0 : i32, i32
  }
}

</mosaic_0001>

<llo_original>
// kernel: tpu_custom_call.1
$region0: #{tpu_custom_call.1}
  #allocation0 [shape = 'u32[]', space=smem, size = 0x4, offset = 0x4, fixed_abs, tag = 'smem constant byte address 0x4 - core index']
  #allocation1 [shape = 'u32[144,128]{1,0:T(1,128)}', space=vmem, size = 0x12000, scoped, tag = 'internal scratch']
  #allocation2 [shape = 'f32[8,128]{1,0:T(8,128)}', space=vmem, size = 0x1000, scoped, tag = 'scratch operand']
  #allocation3 [shape = 'f32[8,128]{1,0:T(8,128)}', space=vmem, size = 0x1000, scoped, tag = 'scratch operand']
  %s0 = inlined_call_operand.hbm [shape: f32[16,128], index: 0, kind: input, shape index: {}]
  %s1 = inlined_call_operand.hbm [shape: f32[16,128], index: 1, kind: input, shape index: {}]
  %s2 = inlined_call_operand.hbm [shape: f32[1,1], index: 2, kind: output, shape index: {}]
  %s3 = sld [smem:[#allocation0]]
  $region34: #{tpu_custom_call.1} parent=0
    _
  %s5 = ssub.s32 1, %s3
  %s6 = scalar_select 0, %s5, %s3
  $region1: #{tpu_custom_call.1} parent=0
    #allocation4 [shape = 'u8[16384]{0}', space=vmem, size = 0x4000, scoped, tag = 'input window, operand 0, single buffered']
    #allocation5 [shape = 's32[1]{0}', space=sflag, size = 0x4, scoped, tag = 'scoped memory for tpu_custom_call.1']
    #allocation6 [shape = 's32[1]{0}', space=sflag, size = 0x4, scoped, tag = 'scoped memory for tpu_custom_call.1']
    #allocation7 [shape = 'u8[16384]{0}', space=vmem, size = 0x4000, scoped, tag = 'input window, operand 1, single buffered']
    #allocation8 [shape = 's32[1]{0}', space=sflag, size = 0x4, scoped, tag = 'scoped memory for tpu_custom_call.1']
    #allocation9 [shape = 'u8[512]{0}', space=smem, size = 0x200, scoped, tag = 'output window, operand 0, single buffered']
    %7 = vsyncpa [#allocation5], 0
    %8 = vsyncpa [#allocation8], 0
    %9 = vsyncpa [#allocation6], 0
    // Predicated region
    $region2: #{tpu_custom_call.1} parent=1 // pred_check
      _
    $region3: #{tpu_custom_call.1} parent=1 // pred_check_branch
      %11 = sbr.rel (0) target = $region5
    $region4: #{tpu_custom_call.1} parent=1 // pred_region
      %s13 = ssub.s32 512, 256
      %14 = vsyncadd [#allocation5], %s13
      %s15 = sshll.u32 [#allocation4], 4
      %s16 = int_to_ptr.vmem [resolvable:$true] %s15
      %21 = dma.hbm_to_vmem [thread:$0]  %s0, 256, %s16, [#allocation5], 128, 128, 8
    $region5: #{tpu_custom_call.1} parent=1 // pred_fallthru
      _
    // Predicated region
    $region6: #{tpu_custom_call.1} parent=1 // pred_check
      _
    $region7: #{tpu_custom_call.1} parent=1 // pred_check_branch
      %23 = sbr.rel (0) target = $region9
    $region8: #{tpu_custom_call.1} parent=1 // pred_region
      %s25 = ssub.s32 512, 256
      %26 = vsyncadd [#allocation8], %s25
      %s27 = sshll.u32 [#allocation7], 4
      %s28 = int_to_ptr.vmem [resolvable:$true] %s27
      %33 = dma.hbm_to_vmem [thread:$0]  %s1, 256, %s28, [#allocation8], 128, 128, 8
    $region9: #{tpu_custom_call.1} parent=1 // pred_fallthru
      _
    // Predicated region
    $region10: #{tpu_custom_call.1} parent=1 // pred_check
      _
    $region11: #{tpu_custom_call.1} parent=1 // pred_check_branch
      %35 = sbr.rel (0) target = $region13
    $region12: #{tpu_custom_call.1} parent=1 // pred_region
      %36 = dma.done [#allocation5], 512
    $region13: #{tpu_custom_call.1} parent=1 // pred_fallthru
      _
    // Predicated region
    $region14: #{tpu_custom_call.1} parent=1 // pred_check
      _
    $region15: #{tpu_custom_call.1} parent=1 // pred_check_branch
      %38 = sbr.rel (0) target = $region17
    $region16: #{tpu_custom_call.1} parent=1 // pred_region
      %39 = dma.done [#allocation8], 512
    $region17: #{tpu_custom_call.1} parent=1 // pred_fallthru
      _
    %p40 = scmp.eq.s32.totalorder 0, 0
    // Predicated region
    $region18: #{tpu_custom_call.1} parent=1 // pred_check
      %p41 = pneg %p40
    $region19: #{tpu_custom_call.1} parent=1 // pred_check_branch
      %43 = sbr.rel (%p41) target = $region21
    $region20: #{tpu_custom_call.1} parent=1 // pred_region
      %44 = vst [vmem:[#allocation2] sm:$0xff] 0.0
      %45 = vst [vmem:[#allocation3] sm:$0xff] 0.0
    $region21: #{tpu_custom_call.1} parent=1 // pred_fallthru
      _
    %v46 = vld [vmem:[#allocation4] sm:$0xff]
    %v47 = vld [vmem:[#allocation4 + $0x8] sm:$0xff]
    %v48 = vld [vmem:[#allocation4 + $0x10] sm:$0xff]
    %v49 = vld [vmem:[#allocation4 + $0x18] sm:$0xff]
    %v50 = vld [vmem:[#allocation7] sm:$0xff]
    %v51 = vld [vmem:[#allocation7 + $0x8] sm:$0xff]
    %v52 = vld [vmem:[#allocation7 + $0x10] sm:$0xff]
    %v53 = vld [vmem:[#allocation7 + $0x18] sm:$0xff]
    %vm54 = vcmp.gt.f32.partialorder %v50, 0.0
    %vm55 = vcmp.gt.f32.partialorder %v51, 0.0
    %vm56 = vcmp.gt.f32.partialorder %v52, 0.0
    %vm57 = vcmp.gt.f32.partialorder %v53, 0.0
    %vm58 = vcmp.eq.f32.partialorder %v50, 0.0
    %vm59 = vcmp.eq.f32.partialorder %v51, 0.0
    %vm60 = vcmp.eq.f32.partialorder %v52, 0.0
    %vm61 = vcmp.eq.f32.partialorder %v53, 0.0
    %v62 = vlaneseq
    %v63 = vshrl.u32 %v62, 7
    %v64 = vadd.s32 %v63, 8
    %v65 = vadd.s32 %v63, 16
    %v66 = vadd.s32 %v63, 24
    %s67 = smul.u32 0, 32
    %v68 = vstv %s67
    %v69 = vadd.s32 %v63, %v68
    %v70 = vadd.s32 %v64, %v68
    %v71 = vadd.s32 %v65, %v68
    %v72 = vadd.s32 %v66, %v68
    %vm73 = vcmp.lt.s32.totalorder %v69, 16
    %vm74 = vcmp.lt.s32.totalorder %v70, 16
    %vm75 = vcmp.lt.s32.totalorder %v71, 16
    %vm76 = vcmp.lt.s32.totalorder %v72, 16
    %vm77 = vmand %vm54, %vm73
    %vm78 = vmand %vm55, %vm74
    %vm79 = vmand %vm56, %vm75
    %vm80 = vmand %vm57, %vm76
    %vm81 = vmand %vm58, %vm73
    %vm82 = vmand %vm59, %vm74
    %vm83 = vmand %vm60, %vm75
    %vm84 = vmand %vm61, %vm76
    %v85 = vsub.f32 1.0, %v46
    %v86 = vsub.f32 1.0, %v47
    %v87 = vsub.f32 1.0, %v48
    %v88 = vsub.f32 1.0, %v49
    %v89 = vsel %vm81, %v85, 1.0
    %v90 = vsel %vm82, %v86, 1.0
    %v91 = vsel %vm83, %v87, 1.0
    %v92 = vsel %vm84, %v88, 1.0
    %v93 = vsel %vm77, %v46, %v89
    %v94 = vsel %vm78, %v47, %v90
    %v95 = vsel %vm79, %v48, %v91
    %v96 = vsel %vm80, %v49, %v92
    %v97 = vsel %vm81, %v46, 0.0
    %v98 = vsel %vm82, %v47, 0.0
    %v99 = vsel %vm83, %v48, 0.0
    %v100 = vsel %vm84, %v49, 0.0
    %v101 = vsel %vm77, %v85, %v97
    %v102 = vsel %vm78, %v86, %v98
    %v103 = vsel %vm79, %v87, %v99
    %v104 = vsel %vm80, %v88, %v100
    %v105 = vlog2.pop %v93
    %v106 = vmul.f32 %v105, 0.6931472
    %v107 = vlog2.pop %v94
    %v108 = vmul.f32 %v107, 0.6931472
    %v109 = vlog2.pop %v95
    %v110 = vmul.f32 %v109, 0.6931472
    %v111 = vlog2.pop %v96
    %v112 = vmul.f32 %v111, 0.6931472
    %v113 = vmul.f32 %v106, %v101
    %v114 = vmul.f32 %v108, %v102
    %v115 = vmul.f32 %v110, %v103
    %v116 = vmul.f32 %v112, %v104
    %v117 = vmul.f32 %v113, %v101
    %v118 = vmul.f32 %v114, %v102
    %v119 = vmul.f32 %v115, %v103
    %v120 = vmul.f32 %v116, %v104
    %v121 = vmul.f32 %v50, %v50
    %v122 = vmul.f32 %v51, %v51
    %v123 = vmul.f32 %v52, %v52
    %v124 = vmul.f32 %v53, %v53
    %v125 = vsel %vm81, 1, 0
    %v126 = vsel %vm82, 1, 0
    %v127 = vsel %vm83, 1, 0
    %v128 = vsel %vm84, 1, 0
    %v129 = vcvt.s32.f32 %v125
    %v130 = vcvt.s32.f32 %v126
    %v131 = vcvt.s32.f32 %v127
    %v132 = vcvt.s32.f32 %v128
    %v133 = vsel %vm77, %v121, %v129
    %v134 = vsel %vm78, %v122, %v130
    %v135 = vsel %vm79, %v123, %v131
    %v136 = vsel %vm80, %v124, %v132
    %v137 = vmul.f32 %v117, %v133
    %v138 = vmul.f32 %v118, %v134
    %v139 = vmul.f32 %v119, %v135
    %v140 = vmul.f32 %v120, %v136
    %v141 = vsel %vm77, %v121, 0.0
    %v142 = vsel %vm78, %v122, 0.0
    %v143 = vsel %vm79, %v123, 0.0
    %v144 = vsel %vm80, %v124, 0.0
    %v145 = vld [vmem:[#allocation2] sm:$0xff]
    %v146 = vadd.f32 %v137, %v138
    %v147 = vadd.f32 %v146, %v139
    %v148 = vadd.f32 %v147, %v140
    %v149 = vadd.f32 %v145, %v148
    %150 = vst [vmem:[#allocation2] sm:$0xff] %v149
    %v151 = vld [vmem:[#allocation3] sm:$0xff]
    %v152 = vadd.f32 %v141, %v142
    %v153 = vadd.f32 %v152, %v143
    %v154 = vadd.f32 %v153, %v144
    %v155 = vadd.f32 %v151, %v154
    %156 = vst [vmem:[#allocation3] sm:$0xff] %v155
    // Predicated region
    $region22: #{tpu_custom_call.1} parent=1 // pred_check
      %p157 = pneg %p40
    $region23: #{tpu_custom_call.1} parent=1 // pred_check_branch
      %159 = sbr.rel (%p157) target = $region25
    $region24: #{tpu_custom_call.1} parent=1 // pred_region
      %v160 = vld [vmem:[#allocation2] sm:$0xff]
      %161 = vadd.xlane.f32.xlu0 %v160
      %v162 = vpop.xlane.xlu0 %161
      %v163 = vrot.slane %v162, 4
      %v164 = vadd.f32 %v162, %v163
      %v165 = vrot.slane %v164, 2
      %v166 = vadd.f32 %v164, %v165
      %v167 = vrot.slane %v166, 1
      %v168 = vadd.f32 %v166, %v167
      %s169 = vtos %v168
      %v170 = vld [vmem:[#allocation3] sm:$0xff]
      %171 = vadd.xlane.f32.xlu0 %v170
      %v172 = vpop.xlane.xlu0 %171
      %v173 = vrot.slane %v172, 4
      %v174 = vadd.f32 %v172, %v173
      %v175 = vrot.slane %v174, 2
      %v176 = vadd.f32 %v174, %v175
      %v177 = vrot.slane %v176, 1
      %v178 = vadd.f32 %v176, %v177
      %s179 = vtos %v178
      %p180 = scmp.gt.f32.partialorder %s179, 0.0
      %s181 = scalar_select %p180, %s179, 1.0
      %s182 = ssub.f32 0.0, %s169
      %v183 = vstv %s181
      %v184 = vrcp.pop %v183
      %s185 = vtos %v184
      %s186 = smul.f32 %s182, %s185
      %s187 = scalar_lea.smem [#allocation9], 0
      %188 = sst [smem:[%s187]] %s186
    $region25: #{tpu_custom_call.1} parent=1 // pred_fallthru
      _
    // Predicated region
    $region26: #{tpu_custom_call.1} parent=1 // pred_check
      _
    $region27: #{tpu_custom_call.1} parent=1 // pred_check_branch
      %190 = sbr.rel (0) target = $region29
    $region28: #{tpu_custom_call.1} parent=1 // pred_region
      %s192 = ssub.s32 16, 16
      %193 = vsyncadd [#allocation6], %s192
      %196 = dma.smem_to_hbm [#allocation9], 16, %s2, [#allocation6]
    $region29: #{tpu_custom_call.1} parent=1 // pred_fallthru
      _
    // Predicated region
    $region30: #{tpu_custom_call.1} parent=1 // pred_check
      _
    $region31: #{tpu_custom_call.1} parent=1 // pred_check_branch
      %198 = sbr.rel (0) target = $region33
    $region32: #{tpu_custom_call.1} parent=1 // pred_region
      %199 = dma.done [#allocation6], 16
    $region33: #{tpu_custom_call.1} parent=1 // pred_fallthru
      _
    %200 = sfence
    %201 = vsyncpa [#allocation5], 1
    %202 = vsyncpa [#allocation8], 1
    %203 = vsyncpa [#allocation6], 1

</llo_original>
